<compile_context>
chip_gen: v7x
topology: tpu7x:2x2x1
jax: 0.10.0
libtpu: 0.0.40
codegen_flags: <defaults>
</compile_context>

<pallas_src>
import functools

import numpy as np
import jax
import jax.numpy as jnp
from jax.experimental import pallas as pl
from jax.experimental.pallas import tpu as pltpu

EPS = 1e-5


def _round_up(x, m):
    return (x + m - 1) // m * m


def _conv_block_kernel(x1_ref, w1_ref, w2_ref, g1_ref, be1_ref, g2_ref, be2_ref,
                       s_ref, st_ref, out_ref, *, n, h, w, nc):
    # x1_ref : (n*h, k1p)   bf16  conv1 im2col operand (kh taps concatenated, K-padded)
    # w1_ref : (k1p, nc)    bf16  banded conv1 weights (kw tap + W zero-pad folded)
    # w2_ref : (3*nc, nc)   bf16  banded conv2 weights
    # g*/be* : (1, Cout)    f32   BatchNorm gamma / beta
    # s_ref  : (nc, Cout)   f32   lane -> channel scatter (per-channel sums)
    # st_ref : (Cout, nc)   f32   channel -> lane broadcast
    # out_ref: (n*h, nc)    f32   lane-dense output slab == (n, h, W, Cout)
    nh = n * h
    inv_count = 1.0 / float(n * h * w)

    def bn_relu(acc, g_ref, be_ref):
        # acc: (nh, nc) f32 conv output.  Training-mode batch stats (biased var),
        # one-pass sum/sumsq in f32 (fine at this scale; Welford if it grows).
        stats = jnp.concatenate(
            [jnp.sum(acc, axis=0, keepdims=True),
             jnp.sum(acc * acc, axis=0, keepdims=True)], axis=0)          # (2, nc)
        ch = jnp.dot(stats, s_ref[...],
                     preferred_element_type=jnp.float32)                  # (2, C)
        mean = ch[0:1, :] * inv_count                                     # (1, C)
        var = ch[1:2, :] * inv_count - mean * mean
        scale = g_ref[...] * jax.lax.rsqrt(var + EPS)                     # (1, C)
        shift = be_ref[...] - mean * scale
        ss = jnp.concatenate([scale, shift], axis=0)                      # (2, C)
        ss_l = jnp.dot(ss, st_ref[...],
                       preferred_element_type=jnp.float32)                # (2, nc)
        return jnp.maximum(acc * ss_l[0:1, :] + ss_l[1:2, :], 0.0)        # (nh, nc)

    # ---- conv1 (+bias folded into BN) + bn1 + relu: one bf16 GEMM -----------
    acc1 = jnp.dot(x1_ref[...], w1_ref[...], preferred_element_type=jnp.float32)
    y1 = bn_relu(acc1, g1_ref, be1_ref)                                   # f32

    # ---- conv2 operand: kh taps of y1 concatenated along lanes --------------
    # Row r of y1 is (batch b, output row hh).  Tap kh=0 needs row hh-1 (zero at
    # hh==0), kh=2 needs hh+1 (zero at hh==h-1); roll contamination across
    # batch boundaries is killed by the same masks.
    row_h = jax.lax.broadcasted_iota(jnp.int32, (nh, nc), 0) % h
    up = jnp.where(row_h == 0, 0.0, jnp.roll(y1, 1, axis=0))
    dn = jnp.where(row_h == h - 1, 0.0, jnp.roll(y1, -1, axis=0))
    x2 = jnp.concatenate([up, y1, dn], axis=-1).astype(jnp.bfloat16)      # (nh, 3*nc)

    # ---- conv2 + bn2 + relu: one bf16 GEMM -----------------------------------
    acc2 = jnp.dot(x2, w2_ref[...], preferred_element_type=jnp.float32)
    out_ref[...] = bn_relu(acc2, g2_ref, be2_ref).astype(out_ref.dtype)


def _build_band(w_conv, width, cin, cout, tap_k, nc, k_pad):
    """Flattened banded weight for one 3x3 SAME conv:
       B[kh*tap_k + wi*cin + ci, wo*cout + co] = w[kh, kw, ci, co]
       with wi = wo + kw - 1 inside [0, width); missing entries / padded rows
       and columns implement the zero padding along W (and nc lane padding)."""
    w_np = np.asarray(w_conv, np.float32)
    band = np.zeros((k_pad, nc), np.float32)
    for kh in range(3):
        for kw in range(3):
            for wo in range(width):
                wi = wo + kw - 1
                if 0 <= wi < width:
                    r0 = kh * tap_k + wi * cin
                    band[r0:r0 + cin, wo * cout:(wo + 1) * cout] = w_np[kh, kw]
    return jnp.asarray(band, jnp.bfloat16)


def _build_channel_maps(width, cout, nc):
    s = np.zeros((nc, cout), np.float32)
    for wo in range(width):
        for co in range(cout):
            s[wo * cout + co, co] = 1.0
    return jnp.asarray(s), jnp.asarray(s.T)


def conv_block(x_nchw, params):
    """x_nchw: (N, Cin, H, W) float32 -> (N, Cout, H, W) float32."""
    w1, b1, g1, be1, w2, b2, g2, be2 = params
    del b1, b2  # exactly cancelled by training-mode BatchNorm mean subtraction
    n, cin, h, width = x_nchw.shape
    cout = w1.shape[-1]
    nh = n * h
    nc = _round_up(width * cout, 128)       # lane-dense flattened (W, Cout)
    k1 = width * cin                        # per-kh-tap contraction for conv1
    k1p = _round_up(3 * k1, 128)            # conv1 GEMM K, lane/MXU aligned
    k2 = 3 * nc                             # conv2 GEMM K (already aligned)

    # Wrapper plumbing (NCHW kept at the boundary to match the PyTorch module):
    # NCHW -> (N, H, W*Cin), H-halo pad, im2col over kh, K-pad, cast bf16.
    x = jnp.transpose(x_nchw, (0, 2, 3, 1)).astype(jnp.float32).reshape(n, h, k1)
    xp = jnp.pad(x, ((0, 0), (1, 1), (0, 0)))
    x1 = jnp.concatenate(
        [xp[:, 0:h, :], xp[:, 1:h + 1, :], xp[:, 2:h + 2, :]], axis=-1)
    x1 = jnp.pad(x1.reshape(nh, 3 * k1), ((0, 0), (0, k1p - 3 * k1)))
    x1 = x1.astype(jnp.bfloat16)

    band1 = _build_band(w1, width, cin, cout, k1, nc, k1p)    # (k1p, nc) bf16
    band2 = _build_band(w2, width, cout, cout, nc, nc, k2)    # (k2,  nc) bf16
    s_mat, st_mat = _build_channel_maps(width, cout, nc)      # f32

    g1 = jnp.asarray(g1, jnp.float32).reshape(1, cout)
    be1 = jnp.asarray(be1, jnp.float32).reshape(1, cout)
    g2 = jnp.asarray(g2, jnp.float32).reshape(1, cout)
    be2 = jnp.asarray(be2, jnp.float32).reshape(1, cout)

    kernel = functools.partial(_conv_block_kernel, n=n, h=h, w=width, nc=nc)

    flops = 2 * nh * nc * (k1p + k2) + 8 * nc * cout
    transcendentals = 2 * cout
    bytes_accessed = int(2 * (x1.size + band1.size + band2.size)
                         + 4 * (nh * nc + 2 * nc * cout + 4 * cout))

    out_flat = pl.pallas_call(
        kernel,
        out_shape=jax.ShapeDtypeStruct((nh, nc), jnp.float32),
        in_specs=[pl.BlockSpec(memory_space=pltpu.MemorySpace.VMEM)] * 9,
        out_specs=pl.BlockSpec(memory_space=pltpu.MemorySpace.VMEM),
        compiler_params=pltpu.CompilerParams(
            # Footprint here is < 1 MiB; re-derive when tiling for v7x (64 MiB).
            vmem_limit_bytes=32 * 1024 * 1024),
        cost_estimate=pl.CostEstimate(
            flops=flops, transcendentals=transcendentals,
            bytes_accessed=bytes_accessed),
    )(x1, band1, band2, g1, be1, g2, be2, s_mat, st_mat)

    out = out_flat[:, :width * cout].reshape(n, h, width, cout)
    return jnp.transpose(out, (0, 3, 1, 2))                               # NCHW


# ------------------------- pure-JAX reference (check) -------------------------
def ref_conv_block(x_nchw, params):
    w1, b1, g1, be1, w2, b2, g2, be2 = params

    def conv(x, w, b):
        y = jax.lax.conv_general_dilated(
            x, w, window_strides=(1, 1), padding="SAME",
            dimension_numbers=("NHWC", "HWIO", "NHWC"))
        return y + b.reshape(1, 1, 1, -1)

    def bn_relu(y, g, be):
        mu = jnp.mean(y, axis=(0, 1, 2), keepdims=True)
        var = jnp.mean((y - mu) ** 2, axis=(0, 1, 2), keepdims=True)
        y = (y - mu) * jax.lax.rsqrt(var + EPS)
        y = y * g.reshape(1, 1, 1, -1) + be.reshape(1, 1, 1, -1)
        return jnp.maximum(y, 0.0)

    x = jnp.transpose(x_nchw, (0, 2, 3, 1))
    y = bn_relu(conv(x, w1, b1), g1, be1)
    y = bn_relu(conv(y, w2, b2), g2, be2)
    return jnp.transpose(y, (0, 3, 1, 2))


if __name__ == "__main__":
    key = jax.random.PRNGKey(0)
    N, Cin, Cout, H, W = 2, 4, 8, 16, 16

    k_x, k_w1, k_b1, k_w2, k_b2 = jax.random.split(key, 5)
    x = jax.random.normal(k_x, (N, Cin, H, W), jnp.float32)

    # Deterministic parameter init (shapes follow the PyTorch module's __init__).
    w1 = 0.1 * jax.random.normal(k_w1, (3, 3, Cin, Cout), jnp.float32)
    b1 = 0.05 * jax.random.normal(k_b1, (1, Cout), jnp.float32)
    g1 = jnp.ones((1, Cout), jnp.float32)    # BatchNorm gamma (PyTorch default)
    be1 = jnp.zeros((1, Cout), jnp.float32)  # BatchNorm beta  (PyTorch default)

    w2 = 0.1 * jax.random.normal(k_w2, (3, 3, Cout, Cout), jnp.float32)
    b2 = 0.05 * jax.random.normal(k_b2, (1, Cout), jnp.float32)
    g2 = jnp.ones((1, Cout), jnp.float32)
    be2 = jnp.zeros((1, Cout), jnp.float32)

    params = (w1, b1, g1, be1, w2, b2, g2, be2)

    out = jax.block_until_ready(conv_block(x, params))
    ref = jax.block_until_ready(ref_conv_block(x, params))

    assert out.shape == (N, Cout, H, W)
    assert bool(jnp.all(jnp.isfinite(out)))
    max_err = float(jnp.max(jnp.abs(out - ref)))
    # bf16 GEMM operands (f32 accumulation) -> loosened tolerance vs f32 ref.
    assert jnp.allclose(out, ref, atol=5e-2, rtol=5e-2), max_err

    print("KERNEL_OK")
</pallas_src>

<mosaic_0001>
module attributes {stable_mosaic.version = 11 : i64} {
  func.func @_conv_block_kernel(%arg0: memref<32x256xbf16, #tpu.memory_space<vmem>>, %arg1: memref<256x128xbf16, #tpu.memory_space<vmem>>, %arg2: memref<384x128xbf16, #tpu.memory_space<vmem>>, %arg3: memref<1x8xf32, #tpu.memory_space<vmem>>, %arg4: memref<1x8xf32, #tpu.memory_space<vmem>>, %arg5: memref<1x8xf32, #tpu.memory_space<vmem>>, %arg6: memref<1x8xf32, #tpu.memory_space<vmem>>, %arg7: memref<128x8xf32, #tpu.memory_space<vmem>>, %arg8: memref<8x128xf32, #tpu.memory_space<vmem>>, %arg9: memref<32x128xf32, #tpu.memory_space<vmem>>) attributes {dimension_semantics = [], scalar_prefetch = 0 : i64, scratch_operands = 0 : i64, tpu.core_type = #tpu.core_type<tc>} {
    %c0 = arith.constant 0 : index
    %c0_0 = arith.constant 0 : index
    %0 = vector.load %arg0[%c0, %c0_0] : memref<32x256xbf16, #tpu.memory_space<vmem>>, vector<32x256xbf16>
    %c0_1 = arith.constant 0 : index
    %c0_2 = arith.constant 0 : index
    %1 = vector.load %arg1[%c0_1, %c0_2] : memref<256x128xbf16, #tpu.memory_space<vmem>>, vector<256x128xbf16>
    %cst = arith.constant dense<0.000000e+00> : vector<32x128xf32>
    %2 = tpu.matmul %0, %1, %cst {dimension_numbers = #tpu.dot_dimension_numbers<[1], [0], [0], [1], [0, 0, 1, 1], [], []>} : vector<32x256xbf16>, vector<256x128xbf16>, vector<32x128xf32> -> vector<32x128xf32>
    %cst_3 = arith.constant dense<0.000000e+00> : vector<128xf32>
    %3 = vector.multi_reduction <add>, %2, %cst_3 [0] : vector<32x128xf32> to vector<128xf32>
    %4 = vector.shape_cast %3 : vector<128xf32> to vector<1x128xf32>
    %5 = arith.mulf %2, %2 : vector<32x128xf32>
    %cst_4 = arith.constant dense<0.000000e+00> : vector<128xf32>
    %6 = vector.multi_reduction <add>, %5, %cst_4 [0] : vector<32x128xf32> to vector<128xf32>
    %7 = vector.shape_cast %6 : vector<128xf32> to vector<1x128xf32>
    %8 = tpu.concatenate %4, %7 in 0 : vector<1x128xf32>, vector<1x128xf32> -> vector<2x128xf32>
    %c0_5 = arith.constant 0 : index
    %c0_6 = arith.constant 0 : index
    %9 = vector.load %arg7[%c0_5, %c0_6] : memref<128x8xf32, #tpu.memory_space<vmem>>, vector<128x8xf32>
    %cst_7 = arith.constant dense<0.000000e+00> : vector<2x8xf32>
    %10 = tpu.matmul %8, %9, %cst_7 {dimension_numbers = #tpu.dot_dimension_numbers<[1], [0], [0], [1], [0, 0, 1, 1], [], []>} : vector<2x128xf32>, vector<128x8xf32>, vector<2x8xf32> -> vector<2x8xf32>
    %11 = vector.extract_strided_slice %10 {offsets = [0, 0], sizes = [1, 8], strides = [1, 1]} : vector<2x8xf32> to vector<1x8xf32>
    %cst_8 = arith.constant 0.001953125 : f32
    %12 = vector.broadcast %cst_8 : f32 to vector<1x8xf32>
    %13 = arith.mulf %11, %12 : vector<1x8xf32>
    %14 = vector.extract_strided_slice %10 {offsets = [1, 0], sizes = [1, 8], strides = [1, 1]} : vector<2x8xf32> to vector<1x8xf32>
    %cst_9 = arith.constant 0.001953125 : f32
    %15 = vector.broadcast %cst_9 : f32 to vector<1x8xf32>
    %16 = arith.mulf %14, %15 : vector<1x8xf32>
    %17 = arith.mulf %13, %13 : vector<1x8xf32>
    %18 = arith.subf %16, %17 : vector<1x8xf32>
    %c0_10 = arith.constant 0 : index
    %c0_11 = arith.constant 0 : index
    %19 = vector.load %arg3[%c0_10, %c0_11] : memref<1x8xf32, #tpu.memory_space<vmem>>, vector<1x8xf32>
    %cst_12 = arith.constant 9.99999974E-6 : f32
    %20 = vector.broadcast %cst_12 : f32 to vector<1x8xf32>
    %21 = arith.addf %18, %20 : vector<1x8xf32>
    %22 = math.rsqrt %21 : vector<1x8xf32>
    %23 = arith.mulf %19, %22 : vector<1x8xf32>
    %c0_13 = arith.constant 0 : index
    %c0_14 = arith.constant 0 : index
    %24 = vector.load %arg4[%c0_13, %c0_14] : memref<1x8xf32, #tpu.memory_space<vmem>>, vector<1x8xf32>
    %25 = arith.mulf %13, %23 : vector<1x8xf32>
    %26 = arith.subf %24, %25 : vector<1x8xf32>
    %27 = tpu.concatenate %23, %26 in 0 : vector<1x8xf32>, vector<1x8xf32> -> vector<2x8xf32>
    %c0_15 = arith.constant 0 : index
    %c0_16 = arith.constant 0 : index
    %28 = vector.load %arg8[%c0_15, %c0_16] : memref<8x128xf32, #tpu.memory_space<vmem>>, vector<8x128xf32>
    %cst_17 = arith.constant dense<0.000000e+00> : vector<2x128xf32>
    %29 = tpu.matmul %27, %28, %cst_17 {dimension_numbers = #tpu.dot_dimension_numbers<[1], [0], [0], [1], [0, 0, 1, 1], [], []>} : vector<2x8xf32>, vector<8x128xf32>, vector<2x128xf32> -> vector<2x128xf32>
    %30 = vector.extract_strided_slice %29 {offsets = [0, 0], sizes = [1, 128], strides = [1, 1]} : vector<2x128xf32> to vector<1x128xf32>
    %31 = vector.broadcast %30 : vector<1x128xf32> to vector<32x128xf32>
    %32 = arith.mulf %2, %31 : vector<32x128xf32>
    %33 = vector.extract_strided_slice %29 {offsets = [1, 0], sizes = [1, 128], strides = [1, 1]} : vector<2x128xf32> to vector<1x128xf32>
    %34 = vector.broadcast %33 : vector<1x128xf32> to vector<32x128xf32>
    %35 = arith.addf %32, %34 : vector<32x128xf32>
    %cst_18 = arith.constant 0.000000e+00 : f32
    %36 = vector.broadcast %cst_18 : f32 to vector<32x128xf32>
    %37 = arith.maximumf %35, %36 : vector<32x128xf32>
    %38 = tpu.iota {dimensions = array<i32: 0>} : vector<32x128xi32>
    %c16_i32 = arith.constant 16 : i32
    %c0_i32 = arith.constant 0 : i32
    %39 = arith.cmpi eq, %c16_i32, %c0_i32 : i32
    %c1_i32 = arith.constant 1 : i32
    %40 = arith.select %39, %c1_i32, %c16_i32 : i32
    %41 = vector.broadcast %40 : i32 to vector<32x128xi32>
    %42 = arith.remsi %38, %41 : vector<32x128xi32>
    %c0_i32_19 = arith.constant 0 : i32
    %43 = vector.broadcast %c0_i32_19 : i32 to vector<32x128xi32>
    %44 = arith.cmpi ne, %42, %43 : vector<32x128xi32>
    %c0_i32_20 = arith.constant 0 : i32
    %45 = vector.broadcast %c0_i32_20 : i32 to vector<32x128xi32>
    %46 = arith.cmpi slt, %42, %45 : vector<32x128xi32>
    %c0_i32_21 = arith.constant 0 : i32
    %47 = arith.cmpi slt, %40, %c0_i32_21 : i32
    %48 = vector.broadcast %47 : i1 to vector<32x128xi1>
    %49 = vector.broadcast %48 : vector<32x128xi1> to vector<32x128xi1>
    %50 = arith.xori %46, %49 : vector<32x128xi1>
    %51 = arith.andi %50, %44 : vector<32x128xi1>
    %52 = vector.broadcast %40 : i32 to vector<32x128xi32>
    %53 = arith.addi %42, %52 : vector<32x128xi32>
    %54 = arith.select %51, %53, %42 : vector<32x128xi1>, vector<32x128xi32>
    %c0_i32_22 = arith.constant 0 : i32
    %55 = vector.broadcast %c0_i32_22 : i32 to vector<32x128xi32>
    %56 = arith.cmpi eq, %54, %55 : vector<32x128xi32>
    %57 = vector.extract_strided_slice %37 {offsets = [31, 0], sizes = [1, 128], strides = [1, 1]} : vector<32x128xf32> to vector<1x128xf32>
    %58 = vector.extract_strided_slice %37 {offsets = [0, 0], sizes = [31, 128], strides = [1, 1]} : vector<32x128xf32> to vector<31x128xf32>
    %59 = tpu.concatenate %57, %58 in 0 : vector<1x128xf32>, vector<31x128xf32> -> vector<32x128xf32>
    %cst_23 = arith.constant 0.000000e+00 : f32
    %60 = vector.broadcast %cst_23 : f32 to vector<32x128xf32>
    %61 = arith.select %56, %60, %59 : vector<32x128xi1>, vector<32x128xf32>
    %c15_i32 = arith.constant 15 : i32
    %62 = vector.broadcast %c15_i32 : i32 to vector<32x128xi32>
    %63 = arith.cmpi eq, %54, %62 : vector<32x128xi32>
    %64 = vector.extract_strided_slice %37 {offsets = [1, 0], sizes = [31, 128], strides = [1, 1]} : vector<32x128xf32> to vector<31x128xf32>
    %65 = vector.extract_strided_slice %37 {offsets = [0, 0], sizes = [1, 128], strides = [1, 1]} : vector<32x128xf32> to vector<1x128xf32>
    %66 = tpu.concatenate %64, %65 in 0 : vector<31x128xf32>, vector<1x128xf32> -> vector<32x128xf32>
    %cst_24 = arith.constant 0.000000e+00 : f32
    %67 = vector.broadcast %cst_24 : f32 to vector<32x128xf32>
    %68 = arith.select %63, %67, %66 : vector<32x128xi1>, vector<32x128xf32>
    %69 = tpu.concatenate %61, %37, %68 in 1 : vector<32x128xf32>, vector<32x128xf32>, vector<32x128xf32> -> vector<32x384xf32>
    %70 = arith.truncf %69 : vector<32x384xf32> to vector<32x384xbf16>
    %c0_25 = arith.constant 0 : index
    %c0_26 = arith.constant 0 : index
    %71 = vector.load %arg2[%c0_25, %c0_26] : memref<384x128xbf16, #tpu.memory_space<vmem>>, vector<384x128xbf16>
    %cst_27 = arith.constant dense<0.000000e+00> : vector<32x128xf32>
    %72 = tpu.matmul %70, %71, %cst_27 {dimension_numbers = #tpu.dot_dimension_numbers<[1], [0], [0], [1], [0, 0, 1, 1], [], []>} : vector<32x384xbf16>, vector<384x128xbf16>, vector<32x128xf32> -> vector<32x128xf32>
    %cst_28 = arith.constant dense<0.000000e+00> : vector<128xf32>
    %73 = vector.multi_reduction <add>, %72, %cst_28 [0] : vector<32x128xf32> to vector<128xf32>
    %74 = vector.shape_cast %73 : vector<128xf32> to vector<1x128xf32>
    %75 = arith.mulf %72, %72 : vector<32x128xf32>
    %cst_29 = arith.constant dense<0.000000e+00> : vector<128xf32>
    %76 = vector.multi_reduction <add>, %75, %cst_29 [0] : vector<32x128xf32> to vector<128xf32>
    %77 = vector.shape_cast %76 : vector<128xf32> to vector<1x128xf32>
    %78 = tpu.concatenate %74, %77 in 0 : vector<1x128xf32>, vector<1x128xf32> -> vector<2x128xf32>
    %c0_30 = arith.constant 0 : index
    %c0_31 = arith.constant 0 : index
    %79 = vector.load %arg7[%c0_30, %c0_31] : memref<128x8xf32, #tpu.memory_space<vmem>>, vector<128x8xf32>
    %cst_32 = arith.constant dense<0.000000e+00> : vector<2x8xf32>
    %80 = tpu.matmul %78, %79, %cst_32 {dimension_numbers = #tpu.dot_dimension_numbers<[1], [0], [0], [1], [0, 0, 1, 1], [], []>} : vector<2x128xf32>, vector<128x8xf32>, vector<2x8xf32> -> vector<2x8xf32>
    %81 = vector.extract_strided_slice %80 {offsets = [0, 0], sizes = [1, 8], strides = [1, 1]} : vector<2x8xf32> to vector<1x8xf32>
    %cst_33 = arith.constant 0.001953125 : f32
    %82 = vector.broadcast %cst_33 : f32 to vector<1x8xf32>
    %83 = arith.mulf %81, %82 : vector<1x8xf32>
    %84 = vector.extract_strided_slice %80 {offsets = [1, 0], sizes = [1, 8], strides = [1, 1]} : vector<2x8xf32> to vector<1x8xf32>
    %cst_34 = arith.constant 0.001953125 : f32
    %85 = vector.broadcast %cst_34 : f32 to vector<1x8xf32>
    %86 = arith.mulf %84, %85 : vector<1x8xf32>
    %87 = arith.mulf %83, %83 : vector<1x8xf32>
    %88 = arith.subf %86, %87 : vector<1x8xf32>
    %c0_35 = arith.constant 0 : index
    %c0_36 = arith.constant 0 : index
    %89 = vector.load %arg5[%c0_35, %c0_36] : memref<1x8xf32, #tpu.memory_space<vmem>>, vector<1x8xf32>
    %cst_37 = arith.constant 9.99999974E-6 : f32
    %90 = vector.broadcast %cst_37 : f32 to vector<1x8xf32>
    %91 = arith.addf %88, %90 : vector<1x8xf32>
    %92 = math.rsqrt %91 : vector<1x8xf32>
    %93 = arith.mulf %89, %92 : vector<1x8xf32>
    %c0_38 = arith.constant 0 : index
    %c0_39 = arith.constant 0 : index
    %94 = vector.load %arg6[%c0_38, %c0_39] : memref<1x8xf32, #tpu.memory_space<vmem>>, vector<1x8xf32>
    %95 = arith.mulf %83, %93 : vector<1x8xf32>
    %96 = arith.subf %94, %95 : vector<1x8xf32>
    %97 = tpu.concatenate %93, %96 in 0 : vector<1x8xf32>, vector<1x8xf32> -> vector<2x8xf32>
    %c0_40 = arith.constant 0 : index
    %c0_41 = arith.constant 0 : index
    %98 = vector.load %arg8[%c0_40, %c0_41] : memref<8x128xf32, #tpu.memory_space<vmem>>, vector<8x128xf32>
    %cst_42 = arith.constant dense<0.000000e+00> : vector<2x128xf32>
    %99 = tpu.matmul %97, %98, %cst_42 {dimension_numbers = #tpu.dot_dimension_numbers<[1], [0], [0], [1], [0, 0, 1, 1], [], []>} : vector<2x8xf32>, vector<8x128xf32>, vector<2x128xf32> -> vector<2x128xf32>
    %100 = vector.extract_strided_slice %99 {offsets = [0, 0], sizes = [1, 128], strides = [1, 1]} : vector<2x128xf32> to vector<1x128xf32>
    %101 = vector.broadcast %100 : vector<1x128xf32> to vector<32x128xf32>
    %102 = arith.mulf %72, %101 : vector<32x128xf32>
    %103 = vector.extract_strided_slice %99 {offsets = [1, 0], sizes = [1, 128], strides = [1, 1]} : vector<2x128xf32> to vector<1x128xf32>
    %104 = vector.broadcast %103 : vector<1x128xf32> to vector<32x128xf32>
    %105 = arith.addf %102, %104 : vector<32x128xf32>
    %cst_43 = arith.constant 0.000000e+00 : f32
    %106 = vector.broadcast %cst_43 : f32 to vector<32x128xf32>
    %107 = arith.maximumf %105, %106 : vector<32x128xf32>
    %c0_44 = arith.constant 0 : index
    %c0_45 = arith.constant 0 : index
    %108 = vector.load %arg9[%c0_44, %c0_45] : memref<32x128xf32, #tpu.memory_space<vmem>>, vector<32x128xf32>
    tpu.vector_store %arg9[%c0_44, %c0_45], %107 {strides = array<i32>} : memref<32x128xf32, #tpu.memory_space<vmem>>, vector<32x128xf32>,
    return
  }
}

</mosaic_0001>

<llo_original>
// kernel: tpu_custom_call.1
$region0: #{tpu_custom_call.1}
  #allocation0 [shape = 'u32[]', space=smem, size = 0x4, offset = 0x4, fixed_abs, tag = 'smem constant byte address 0x4 - core index']
  #allocation1 [shape = 'u32[144,128]{1,0:T(1,128)}', space=vmem, size = 0x12000, scoped, tag = 'internal scratch']
  %s0 = inlined_call_operand.hbm [shape: bf16[32,256], index: 0, kind: input, shape index: {}]
  %s1 = inlined_call_operand.vmem [shape: bf16[256,128], index: 1, kind: input, shape index: {}]
  %s2 = inlined_call_operand.hbm [shape: bf16[384,128], index: 2, kind: input, shape index: {}]
  %s3 = inlined_call_operand.vmem [shape: f32[1,8], index: 3, kind: input, shape index: {}]
  %s4 = inlined_call_operand.vmem [shape: f32[1,8], index: 4, kind: input, shape index: {}]
  %s5 = inlined_call_operand.vmem [shape: f32[1,8], index: 5, kind: input, shape index: {}]
  %s6 = inlined_call_operand.vmem [shape: f32[1,8], index: 6, kind: input, shape index: {}]
  %s7 = inlined_call_operand.vmem [shape: f32[128,8], index: 7, kind: input, shape index: {}]
  %s8 = inlined_call_operand.vmem [shape: f32[8,128], index: 8, kind: input, shape index: {}]
  %s9 = inlined_call_operand.hbm [shape: f32[32,128], index: 9, kind: output, shape index: {}]
  %s10 = sld [smem:[#allocation0]]
  $region54: #{tpu_custom_call.1} parent=0
    _
  %s12 = ssub.s32 1, %s10
  %s13 = scalar_select 0, %s12, %s10
  $region1: #{tpu_custom_call.1} parent=0
    #allocation2 [shape = 'u8[16384]{0}', space=vmem, size = 0x4000, scoped, tag = 'input window, operand 0, single buffered']
    #allocation3 [shape = 's32[1]{0}', space=sflag, size = 0x4, scoped, tag = 'scoped memory for tpu_custom_call.1']
    #allocation4 [shape = 's32[1]{0}', space=sflag, size = 0x4, scoped, tag = 'scoped memory for tpu_custom_call.1']
    #allocation5 [shape = 'u8[98304]{0}', space=vmem, size = 0x18000, scoped, tag = 'input window, operand 2, single buffered']
    #allocation6 [shape = 's32[1]{0}', space=sflag, size = 0x4, scoped, tag = 'scoped memory for tpu_custom_call.1']
    #allocation7 [shape = 'u8[16384]{0}', space=vmem, size = 0x4000, scoped, tag = 'output window, operand 0, single buffered']
    %14 = vsyncpa [#allocation3], 0
    %15 = vsyncpa [#allocation6], 0
    %16 = vsyncpa [#allocation4], 0
    // Predicated region
    $region2: #{tpu_custom_call.1} parent=1 // pred_check
      _
    $region3: #{tpu_custom_call.1} parent=1 // pred_check_branch
      %18 = sbr.rel (0) target = $region5
    $region4: #{tpu_custom_call.1} parent=1 // pred_region
      %s20 = ssub.s32 512, 512
      %21 = vsyncadd [#allocation3], %s20
      %s22 = sshll.u32 [#allocation2], 4
      %s23 = int_to_ptr.vmem [resolvable:$true] %s22
      %28 = dma.hbm_to_vmem [thread:$0]  %s0, 512, %s23, [#allocation3], 128, 128, 8
    $region5: #{tpu_custom_call.1} parent=1 // pred_fallthru
      _
    // Predicated region
    $region6: #{tpu_custom_call.1} parent=1 // pred_check
      _
    $region7: #{tpu_custom_call.1} parent=1 // pred_check_branch
      %30 = sbr.rel (0) target = $region9
    $region8: #{tpu_custom_call.1} parent=1 // pred_region
      _
    $region9: #{tpu_custom_call.1} parent=1 // pred_fallthru
      _
    // Predicated region
    $region10: #{tpu_custom_call.1} parent=1 // pred_check
      _
    $region11: #{tpu_custom_call.1} parent=1 // pred_check_branch
      %32 = sbr.rel (0) target = $region13
    $region12: #{tpu_custom_call.1} parent=1 // pred_region
      %s34 = ssub.s32 3072, 3072
      %35 = vsyncadd [#allocation6], %s34
      %s36 = sshll.u32 [#allocation5], 4
      %s37 = int_to_ptr.vmem [resolvable:$true] %s36
      %42 = dma.hbm_to_vmem [thread:$0]  %s2, 3072, %s37, [#allocation6], 64, 64, 4
    $region13: #{tpu_custom_call.1} parent=1 // pred_fallthru
      _
    // Predicated region
    $region14: #{tpu_custom_call.1} parent=1 // pred_check
      _
    $region15: #{tpu_custom_call.1} parent=1 // pred_check_branch
      %44 = sbr.rel (0) target = $region17
    $region16: #{tpu_custom_call.1} parent=1 // pred_region
      _
    $region17: #{tpu_custom_call.1} parent=1 // pred_fallthru
      _
    // Predicated region
    $region18: #{tpu_custom_call.1} parent=1 // pred_check
      _
    $region19: #{tpu_custom_call.1} parent=1 // pred_check_branch
      %46 = sbr.rel (0) target = $region21
    $region20: #{tpu_custom_call.1} parent=1 // pred_region
      _
    $region21: #{tpu_custom_call.1} parent=1 // pred_fallthru
      _
    // Predicated region
    $region22: #{tpu_custom_call.1} parent=1 // pred_check
      _
    $region23: #{tpu_custom_call.1} parent=1 // pred_check_branch
      %48 = sbr.rel (0) target = $region25
    $region24: #{tpu_custom_call.1} parent=1 // pred_region
      _
    $region25: #{tpu_custom_call.1} parent=1 // pred_fallthru
      _
    // Predicated region
    $region26: #{tpu_custom_call.1} parent=1 // pred_check
      _
    $region27: #{tpu_custom_call.1} parent=1 // pred_check_branch
      %50 = sbr.rel (0) target = $region29
    $region28: #{tpu_custom_call.1} parent=1 // pred_region
      _
    $region29: #{tpu_custom_call.1} parent=1 // pred_fallthru
      _
    // Predicated region
    $region30: #{tpu_custom_call.1} parent=1 // pred_check
      _
    $region31: #{tpu_custom_call.1} parent=1 // pred_check_branch
      %52 = sbr.rel (0) target = $region33
    $region32: #{tpu_custom_call.1} parent=1 // pred_region
      _
    $region33: #{tpu_custom_call.1} parent=1 // pred_fallthru
      _
    // Predicated region
    $region34: #{tpu_custom_call.1} parent=1 // pred_check
      _
    $region35: #{tpu_custom_call.1} parent=1 // pred_check_branch
      %54 = sbr.rel (0) target = $region37
    $region36: #{tpu_custom_call.1} parent=1 // pred_region
      _
    $region37: #{tpu_custom_call.1} parent=1 // pred_fallthru
      _
    // Predicated region
    $region38: #{tpu_custom_call.1} parent=1 // pred_check
      _
    $region39: #{tpu_custom_call.1} parent=1 // pred_check_branch
      %56 = sbr.rel (0) target = $region41
    $region40: #{tpu_custom_call.1} parent=1 // pred_region
      %57 = dma.done [#allocation3], 512
    $region41: #{tpu_custom_call.1} parent=1 // pred_fallthru
      _
    // Predicated region
    $region42: #{tpu_custom_call.1} parent=1 // pred_check
      _
    $region43: #{tpu_custom_call.1} parent=1 // pred_check_branch
      %59 = sbr.rel (0) target = $region45
    $region44: #{tpu_custom_call.1} parent=1 // pred_region
      %60 = dma.done [#allocation6], 3072
    $region45: #{tpu_custom_call.1} parent=1 // pred_fallthru
      _
    %v62 = vld [vmem:[#allocation2] sm:$0xff]
    %v63 = vld [vmem:[#allocation2 + $0x8] sm:$0xff]
    %v64 = vld [vmem:[#allocation2 + $0x10] sm:$0xff]
    %v65 = vld [vmem:[#allocation2 + $0x18] sm:$0xff]
    %v66 = vld [vmem:[%s1] sm:$0xf]
    %v67 = vld [vmem:[%s1 + $0x4] sm:$0xf]
    %v68 = vld [vmem:[%s1 + $0x8] sm:$0xf]
    %v69 = vld [vmem:[%s1 + $0xc] sm:$0xf]
    %v70 = vld [vmem:[%s1 + $0x10] sm:$0xf]
    %v71 = vld [vmem:[%s1 + $0x14] sm:$0xf]
    %v72 = vld [vmem:[%s1 + $0x18] sm:$0xf]
    %v73 = vld [vmem:[%s1 + $0x1c] sm:$0xf]
    %v74 = vld [vmem:[%s1 + $0x20] sm:$0xf]
    %v75 = vld [vmem:[%s1 + $0x24] sm:$0xf]
    %v76 = vld [vmem:[%s1 + $0x28] sm:$0xf]
    %v77 = vld [vmem:[%s1 + $0x2c] sm:$0xf]
    %v78 = vld [vmem:[%s1 + $0x30] sm:$0xf]
    %v79 = vld [vmem:[%s1 + $0x34] sm:$0xf]
    %v80 = vld [vmem:[%s1 + $0x38] sm:$0xf]
    %v81 = vld [vmem:[%s1 + $0x3c] sm:$0xf]
    %v82 = vld [vmem:[%s1 + $0x40] sm:$0xf]
    %v83 = vld [vmem:[%s1 + $0x44] sm:$0xf]
    %v84 = vld [vmem:[%s1 + $0x48] sm:$0xf]
    %v85 = vld [vmem:[%s1 + $0x4c] sm:$0xf]
    %v86 = vld [vmem:[%s1 + $0x50] sm:$0xf]
    %v87 = vld [vmem:[%s1 + $0x54] sm:$0xf]
    %v88 = vld [vmem:[%s1 + $0x58] sm:$0xf]
    %v89 = vld [vmem:[%s1 + $0x5c] sm:$0xf]
    %v90 = vld [vmem:[%s1 + $0x60] sm:$0xf]
    %v91 = vld [vmem:[%s1 + $0x64] sm:$0xf]
    %v92 = vld [vmem:[%s1 + $0x68] sm:$0xf]
    %v93 = vld [vmem:[%s1 + $0x6c] sm:$0xf]
    %v94 = vld [vmem:[%s1 + $0x70] sm:$0xf]
    %v95 = vld [vmem:[%s1 + $0x74] sm:$0xf]
    %v96 = vld [vmem:[%s1 + $0x78] sm:$0xf]
    %v97 = vld [vmem:[%s1 + $0x7c] sm:$0xf]
    %v102 = vunpack.c.l.b16 %v62
    %v103 = vunpack.c.h.b16 %v62
    %v104 = vunpack.c.l.b16 %v63
    %v105 = vunpack.c.h.b16 %v63
    %v106 = vunpack.c.l.b16 %v64
    %v107 = vunpack.c.h.b16 %v64
    %v108 = vunpack.c.l.b16 %v65
    %v109 = vunpack.c.h.b16 %v65
    %v110 = vpack.c.b16 %v104, %v102
    %v111 = vpack.c.b16 %v105, %v103
    %v112 = vpack.c.b16 %v108, %v106
    %v113 = vpack.c.b16 %v109, %v107
    %v150 = vunpack.c.l.b16 %v66
    %v151 = vunpack.c.l.b16 %v67
    %v152 = vunpack.c.l.b16 %v68
    %v153 = vunpack.c.l.b16 %v69
    %v154 = vunpack.c.l.b16 %v70
    %v155 = vunpack.c.l.b16 %v71
    %v156 = vunpack.c.l.b16 %v72
    %v157 = vunpack.c.l.b16 %v73
    %v158 = vunpack.c.l.b16 %v74
    %v159 = vunpack.c.l.b16 %v75
    %v160 = vunpack.c.l.b16 %v76
    %v161 = vunpack.c.l.b16 %v77
    %v162 = vunpack.c.l.b16 %v78
    %v163 = vunpack.c.l.b16 %v79
    %v164 = vunpack.c.l.b16 %v80
    %v165 = vunpack.c.l.b16 %v81
    %v166 = vunpack.c.l.b16 %v82
    %v167 = vunpack.c.l.b16 %v83
    %v168 = vunpack.c.l.b16 %v84
    %v169 = vunpack.c.l.b16 %v85
    %v170 = vunpack.c.l.b16 %v86
    %v171 = vunpack.c.l.b16 %v87
    %v172 = vunpack.c.l.b16 %v88
    %v173 = vunpack.c.l.b16 %v89
    %v174 = vunpack.c.l.b16 %v90
    %v175 = vunpack.c.l.b16 %v91
    %v176 = vunpack.c.l.b16 %v92
    %v177 = vunpack.c.l.b16 %v93
    %v178 = vunpack.c.l.b16 %v94
    %v179 = vunpack.c.l.b16 %v95
    %v180 = vunpack.c.l.b16 %v96
    %v181 = vunpack.c.l.b16 %v97
    %v182 = vpack.c.b16 %v151, %v150
    %v183 = vpack.c.b16 %v153, %v152
    %v184 = vpack.c.b16 %v155, %v154
    %v185 = vpack.c.b16 %v157, %v156
    %v186 = vpack.c.b16 %v159, %v158
    %v187 = vpack.c.b16 %v161, %v160
    %v188 = vpack.c.b16 %v163, %v162
    %v189 = vpack.c.b16 %v165, %v164
    %v190 = vpack.c.b16 %v167, %v166
    %v191 = vpack.c.b16 %v169, %v168
    %v192 = vpack.c.b16 %v171, %v170
    %v193 = vpack.c.b16 %v173, %v172
    %v194 = vpack.c.b16 %v175, %v174
    %v195 = vpack.c.b16 %v177, %v176
    %v196 = vpack.c.b16 %v179, %v178
    %v197 = vpack.c.b16 %v181, %v180
    %214 = vmatprep.subr.bf16.mxu0 0
    %215 = vmatpush1.bf16.msra.mxu0 %v182
    %216 = vmatprep.subr.bf16.mxu0 0
    %217 = vmatpush1.bf16.msra.mxu0 %v183
    %218 = vmatprep.subr.bf16.mxu0 0
    %219 = vmatpush1.bf16.msra.mxu0 %v184
    %220 = vmatprep.subr.bf16.mxu0 0
    %221 = vmatpush1.bf16.msra.mxu0 %v185
    %222 = vmatprep.subr.bf16.mxu0 0
    %223 = vmatpush1.bf16.msra.mxu0 %v186
    %224 = vmatprep.subr.bf16.mxu0 0
    %225 = vmatpush1.bf16.msra.mxu0 %v187
    %226 = vmatprep.subr.bf16.mxu0 0
    %227 = vmatpush1.bf16.msra.mxu0 %v188
    %228 = vmatprep.subr.bf16.mxu0 0
    %229 = vmatpush1.bf16.msra.mxu0 %v189
    %230 = vmatprep.subr.bf16.mxu0 0
    %231 = vmatpush1.bf16.msra.mxu0 %v190
    %232 = vmatprep.subr.bf16.mxu0 0
    %233 = vmatpush1.bf16.msra.mxu0 %v191
    %234 = vmatprep.subr.bf16.mxu0 0
    %235 = vmatpush1.bf16.msra.mxu0 %v192
    %236 = vmatprep.subr.bf16.mxu0 0
    %237 = vmatpush1.bf16.msra.mxu0 %v193
    %238 = vmatprep.subr.bf16.mxu0 0
    %239 = vmatpush1.bf16.msra.mxu0 %v194
    %240 = vmatprep.subr.bf16.mxu0 0
    %241 = vmatpush1.bf16.msra.mxu0 %v195
    %242 = vmatprep.subr.bf16.mxu0 0
    %243 = vmatpush1.bf16.msra.mxu0 %v196
    %244 = vmatprep.subr.bf16.mxu0 0
    %245 = vmatpush1.bf16.msra.mxu0 %v197
    %246 = vmatprep.mubr.bf16.mxu0 %v111
    %247 = vmatmul.mubr.bf16.gmra.mrb[0].mxu0 %v110
    %v248 = vpop.f32.mrb[0].mxu0
    %v249 = vadd.f32 0.0, %v248
    %v250 = vpop.f32.mrb[0].mxu0
    %v251 = vpop.f32.mrb[0].mxu0
    %v252 = vadd.f32 0.0, %v251
    %v253 = vpop.f32.mrb[0].mxu0
    %254 = vmatprep.mubr.bf16.mxu0 %v113
    %255 = vmatmul.mubr.bf16.gmra.mrb[0].mxu0 %v112
    %v256 = vpop.f32.mrb[0].mxu0
    %v257 = vadd.f32 0.0, %v256
    %v258 = vpop.f32.mrb[0].mxu0
    %v259 = vpop.f32.mrb[0].mxu0
    %v260 = vadd.f32 0.0, %v259
    %v261 = vpop.f32.mrb[0].mxu0
    %262 = vdwg.mxu0
    %v263 = vadd.f32 %v249, %v252
    %v264 = vadd.f32 %v263, %v257
    %v265 = vadd.f32 %v264, %v260
    %v266 = vrot.slane %v265, 4
    %v267 = vadd.f32 %v265, %v266
    %v268 = vrot.slane %v267, 2
    %v269 = vadd.f32 %v267, %v268
    %v270 = vrot.slane %v269, 1
    %v271 = vadd.f32 %v269, %v270
    %v272 = vmul.f32 %v249, %v249
    %v273 = vmul.f32 %v252, %v252
    %v274 = vmul.f32 %v257, %v257
    %v275 = vmul.f32 %v260, %v260
    %v276 = vadd.f32 %v272, %v273
    %v277 = vadd.f32 %v276, %v274
    %v278 = vadd.f32 %v277, %v275
    %v279 = vrot.slane %v278, 4
    %v280 = vadd.f32 %v278, %v279
    %v281 = vrot.slane %v280, 2
    %v282 = vadd.f32 %v280, %v281
    %v283 = vrot.slane %v282, 1
    %v284 = vadd.f32 %v282, %v283
    %vm285 = vcmask 1040384
    %v286 = vsel %vm285, %v271, %v284
    %v287 = vld [vmem:[%s7] sm:$0xff]
    %v288 = vld [vmem:[%s7 + $0x8] sm:$0xff]
    %v289 = vld [vmem:[%s7 + $0x10] sm:$0xff]
    %v290 = vld [vmem:[%s7 + $0x18] sm:$0xff]
    %v291 = vld [vmem:[%s7 + $0x20] sm:$0xff]
    %v292 = vld [vmem:[%s7 + $0x28] sm:$0xff]
    %v293 = vld [vmem:[%s7 + $0x30] sm:$0xff]
    %v294 = vld [vmem:[%s7 + $0x38] sm:$0xff]
    %v295 = vld [vmem:[%s7 + $0x40] sm:$0xff]
    %v296 = vld [vmem:[%s7 + $0x48] sm:$0xff]
    %v297 = vld [vmem:[%s7 + $0x50] sm:$0xff]
    %v298 = vld [vmem:[%s7 + $0x58] sm:$0xff]
    %v299 = vld [vmem:[%s7 + $0x60] sm:$0xff]
    %v300 = vld [vmem:[%s7 + $0x68] sm:$0xff]
    %v301 = vld [vmem:[%s7 + $0x70] sm:$0xff]
    %v302 = vld [vmem:[%s7 + $0x78] sm:$0xff]
    %303 = vmatprep.subr.mxu0 0.0
    %304 = vmatpush1.msra.mxu0 %v287
    %305 = vmatprep.subr.mxu0 0.0
    %306 = vmatpush1.msra.mxu0 %v288
    %307 = vmatprep.subr.mxu0 0.0
    %308 = vmatpush1.msra.mxu0 %v289
    %309 = vmatprep.subr.mxu0 0.0
    %310 = vmatpush1.msra.mxu0 %v290
    %311 = vmatprep.subr.mxu0 0.0
    %312 = vmatpush1.msra.mxu0 %v291
    %313 = vmatprep.subr.mxu0 0.0
    %314 = vmatpush1.msra.mxu0 %v292
    %315 = vmatprep.subr.mxu0 0.0
    %316 = vmatpush1.msra.mxu0 %v293
    %317 = vmatprep.subr.mxu0 0.0
    %318 = vmatpush1.msra.mxu0 %v294
    %319 = vmatprep.subr.mxu0 0.0
    %320 = vmatpush1.msra.mxu0 %v295
    %321 = vmatprep.subr.mxu0 0.0
    %322 = vmatpush1.msra.mxu0 %v296
    %323 = vmatprep.subr.mxu0 0.0
    %324 = vmatpush1.msra.mxu0 %v297
    %325 = vmatprep.subr.mxu0 0.0
    %326 = vmatpush1.msra.mxu0 %v298
    %327 = vmatprep.subr.mxu0 0.0
    %328 = vmatpush1.msra.mxu0 %v299
    %329 = vmatprep.subr.mxu0 0.0
    %330 = vmatpush1.msra.mxu0 %v300
    %331 = vmatprep.subr.mxu0 0.0
    %332 = vmatpush1.msra.mxu0 %v301
    %333 = vmatprep.subr.mxu0 0.0
    %334 = vmatpush1.msra.mxu0 %v302
    %335 = vmatprep.subr.mxu0 0.0
    %336 = vmatpush1.msra.mxu0 0.0
    %337 = vmatprep.subr.mxu0 0.0
    %338 = vmatpush1.msra.mxu0 0.0
    %339 = vmatprep.subr.mxu0 0.0
    %340 = vmatpush1.msra.mxu0 0.0
    %341 = vmatprep.subr.mxu0 0.0
    %342 = vmatpush1.msra.mxu0 0.0
    %343 = vmatprep.subr.mxu0 0.0
    %344 = vmatpush1.msra.mxu0 0.0
    %345 = vmatprep.subr.mxu0 0.0
    %346 = vmatpush1.msra.mxu0 0.0
    %347 = vmatprep.subr.mxu0 0.0
    %348 = vmatpush1.msra.mxu0 0.0
    %349 = vmatprep.subr.mxu0 0.0
    %350 = vmatpush1.msra.mxu0 0.0
    %351 = vmatprep.subr.mxu0 0.0
    %352 = vmatpush1.msra.mxu0 0.0
    %353 = vmatprep.subr.mxu0 0.0
    %354 = vmatpush1.msra.mxu0 0.0
    %355 = vmatprep.subr.mxu0 0.0
    %356 = vmatpush1.msra.mxu0 0.0
    %357 = vmatprep.subr.mxu0 0.0
    %358 = vmatpush1.msra.mxu0 0.0
    %359 = vmatprep.subr.mxu0 0.0
    %360 = vmatpush1.msra.mxu0 0.0
    %361 = vmatprep.subr.mxu0 0.0
    %362 = vmatpush1.msra.mxu0 0.0
    %363 = vmatprep.subr.mxu0 0.0
    %364 = vmatpush1.msra.mxu0 0.0
    %365 = vmatprep.subr.mxu0 0.0
    %366 = vmatpush1.msra.mxu0 0.0
    %367 = vmatprep.mubr.f32.mxu0 0.0
    %368 = vmatmul.mubr.f32.gmra.mrb[0].mxu0 %v286
    %v369 = vpop.f32.mrb[0].mxu0
    %v370 = vadd.f32 0.0, %v369
    %v371 = vpop.f32.mrb[0].mxu0
    %372 = vdwg.mxu0
    %v373 = vmul.f32 %v370, 0.001953125
    %v374 = vmul.f32 %v373, %v373
    %v376 = vrot.slane %v374, 7
    %v378 = vsub.f32 %v373, %v376
    %v379 = vld [vmem:[%s3] sm:$0x1]
    %v380 = vadd.f32 %v378, 1e-05
    %v381 = vrsqrt.pop %v380
    %v384 = vunpack.c.l.s4 1966171168
    %v385 = vunpack.c.0.s8 %v384
    %v386 = vlaneseq
    %v387 = vshrl.u32 %v386, 7
    %v388 = vsub.s32 %v385, %v387
    %v389 = vrot.slane %v381, %v388
    %v390 = vcombine.high %v389, %v389
    %v392 = vunpack.c.l.s4 1966171168
    %v393 = vunpack.c.0.s8 %v392
    %v394 = vlaneseq
    %v395 = vshrl.u32 %v394, 7
    %v396 = vsub.s32 %v393, %v395
    %v397 = vrot.slane %v390, %v396
    %v399 = vmul.f32 %v379, %v397
    %v400 = vld [vmem:[%s4] sm:$0x1]
    %v401 = vmul.f32 %v373, %v399
    %v402 = vsub.f32 %v400, %v401
    %v404 = vlaneseq
    %v405 = vshrl.u32 %v404, 7
    %v406 = vsub.s32 0, %v405
    %v407 = vrot.slane %v402, %v406
    %v409 = vsel %vm285, %v399, %v407
    %v410 = vld [vmem:[%s8] sm:$0xff]
    %vm411 = vcmask 64512
    %v413 = vsel %vm411, %v409, 0
    %415 = vmatprep.subr.mxu0 0.0
    %416 = vmatpush1.msra.mxu0 %v410
    %417 = vmatprep.subr.mxu0 0.0
    %418 = vmatpush1.msra.mxu0 0.0
    %419 = vmatprep.subr.mxu0 0.0
    %420 = vmatpush1.msra.mxu0 0.0
    %421 = vmatprep.subr.mxu0 0.0
    %422 = vmatpush1.msra.mxu0 0.0
    %423 = vmatprep.subr.mxu0 0.0
    %424 = vmatpush1.msra.mxu0 0.0
    %425 = vmatprep.subr.mxu0 0.0
    %426 = vmatpush1.msra.mxu0 0.0
    %427 = vmatprep.subr.mxu0 0.0
    %428 = vmatpush1.msra.mxu0 0.0
    %429 = vmatprep.subr.mxu0 0.0
    %430 = vmatpush1.msra.mxu0 0.0
    %431 = vmatprep.subr.mxu0 0.0
    %432 = vmatpush1.msra.mxu0 0.0
    %433 = vmatprep.subr.mxu0 0.0
    %434 = vmatpush1.msra.mxu0 0.0
    %435 = vmatprep.subr.mxu0 0.0
    %436 = vmatpush1.msra.mxu0 0.0
    %437 = vmatprep.subr.mxu0 0.0
    %438 = vmatpush1.msra.mxu0 0.0
    %439 = vmatprep.subr.mxu0 0.0
    %440 = vmatpush1.msra.mxu0 0.0
    %441 = vmatprep.subr.mxu0 0.0
    %442 = vmatpush1.msra.mxu0 0.0
    %443 = vmatprep.subr.mxu0 0.0
    %444 = vmatpush1.msra.mxu0 0.0
    %445 = vmatprep.subr.mxu0 0.0
    %446 = vmatpush1.msra.mxu0 0.0
    %447 = vmatprep.subr.mxu0 0.0
    %448 = vmatpush1.msra.mxu0 0.0
    %449 = vmatprep.subr.mxu0 0.0
    %450 = vmatpush1.msra.mxu0 0.0
    %451 = vmatprep.subr.mxu0 0.0
    %452 = vmatpush1.msra.mxu0 0.0
    %453 = vmatprep.subr.mxu0 0.0
    %454 = vmatpush1.msra.mxu0 0.0
    %455 = vmatprep.subr.mxu0 0.0
    %456 = vmatpush1.msra.mxu0 0.0
    %457 = vmatprep.subr.mxu0 0.0
    %458 = vmatpush1.msra.mxu0 0.0
    %459 = vmatprep.subr.mxu0 0.0
    %460 = vmatpush1.msra.mxu0 0.0
    %461 = vmatprep.subr.mxu0 0.0
    %462 = vmatpush1.msra.mxu0 0.0
    %463 = vmatprep.subr.mxu0 0.0
    %464 = vmatpush1.msra.mxu0 0.0
    %465 = vmatprep.subr.mxu0 0.0
    %466 = vmatpush1.msra.mxu0 0.0
    %467 = vmatprep.subr.mxu0 0.0
    %468 = vmatpush1.msra.mxu0 0.0
    %469 = vmatprep.subr.mxu0 0.0
    %470 = vmatpush1.msra.mxu0 0.0
    %471 = vmatprep.subr.mxu0 0.0
    %472 = vmatpush1.msra.mxu0 0.0
    %473 = vmatprep.subr.mxu0 0.0
    %474 = vmatpush1.msra.mxu0 0.0
    %475 = vmatprep.subr.mxu0 0.0
    %476 = vmatpush1.msra.mxu0 0.0
    %477 = vmatprep.subr.mxu0 0.0
    %478 = vmatpush1.msra.mxu0 0.0
    %479 = vmatprep.mubr.f32.mxu0 0.0
    %480 = vmatmul.mubr.f32.gmra.mrb[0].mxu0 %v413
    %v481 = vpop.f32.mrb[0].mxu0
    %v482 = vadd.f32 0.0, %v481
    %v483 = vpop.f32.mrb[0].mxu0
    %484 = vdwg.mxu0
    %v485 = vlaneseq
    %v486 = vshrl.u32 %v485, 7
    %v487 = vsub.s32 0, %v486
    %v488 = vrot.slane %v482, %v487
    %v489 = vmul.f32 %v249, %v488
    %v490 = vmul.f32 %v252, %v488
    %v491 = vmul.f32 %v257, %v488
    %v492 = vmul.f32 %v260, %v488
    %v493 = vlaneseq
    %v494 = vshrl.u32 %v493, 7
    %v495 = vsub.s32 1, %v494
    %v496 = vrot.slane %v482, %v495
    %v497 = vadd.f32 %v489, %v496
    %v498 = vadd.f32 %v490, %v496
    %v499 = vadd.f32 %v491, %v496
    %v500 = vadd.f32 %v492, %v496
    %v501 = vmax.f32 %v497, 0.0
    %v502 = vmax.f32 %v498, 0.0
    %v503 = vmax.f32 %v499, 0.0
    %v504 = vmax.f32 %v500, 0.0
    %v505 = vlaneseq
    %v506 = vshrl.u32 %v505, 7
    %v507 = vadd.s32 %v506, 8
    %v508 = vadd.s32 %v506, 16
    %v509 = vadd.s32 %v506, 24
    %vm510 = vcmp.lt.s32.totalorder %v506, 0
    %v511 = vsub.s32 0, %v506
    %v512 = vsel %vm510, %v511, %v506
    %v513 = vshrl.u32 %v512, 4
    %v514 = vand.u32 %v512, 15
    %v515 = vsub.s32 0, %v514
    %v516 = vsel %vm510, %v515, %v514
    %vm517 = vcmp.lt.s32.totalorder %v507, 0
    %v518 = vsub.s32 0, %v507
    %v519 = vsel %vm517, %v518, %v507
    %v520 = vshrl.u32 %v519, 4
    %v521 = vand.u32 %v519, 15
    %v522 = vsub.s32 0, %v521
    %v523 = vsel %vm517, %v522, %v521
    %vm524 = vcmp.lt.s32.totalorder %v508, 0
    %v525 = vsub.s32 0, %v508
    %v526 = vsel %vm524, %v525, %v508
    %v527 = vshrl.u32 %v526, 4
    %v528 = vand.u32 %v526, 15
    %v529 = vsub.s32 0, %v528
    %v530 = vsel %vm524, %v529, %v528
    %vm531 = vcmp.lt.s32.totalorder %v509, 0
    %v532 = vsub.s32 0, %v509
    %v533 = vsel %vm531, %v532, %v509
    %v534 = vshrl.u32 %v533, 4
    %v535 = vand.u32 %v533, 15
    %v536 = vsub.s32 0, %v535
    %v537 = vsel %vm531, %v536, %v535
    %vm538 = vcmp.ne.s32.totalorder %v516, 0
    %vm539 = vcmp.ne.s32.totalorder %v523, 0
    %vm540 = vcmp.ne.s32.totalorder %v530, 0
    %vm541 = vcmp.ne.s32.totalorder %v537, 0
    %vm542 = vcmp.lt.s32.totalorder %v516, 0
    %vm543 = vcmp.lt.s32.totalorder %v523, 0
    %vm544 = vcmp.lt.s32.totalorder %v530, 0
    %vm545 = vcmp.lt.s32.totalorder %v537, 0
    %vm546 = vmand %vm542, %vm538
    %vm547 = vmand %vm543, %vm539
    %vm548 = vmand %vm544, %vm540
    %vm549 = vmand %vm545, %vm541
    %v550 = vadd.s32 %v516, 16
    %v551 = vadd.s32 %v523, 16
    %v552 = vadd.s32 %v530, 16
    %v553 = vadd.s32 %v537, 16
    %v554 = vsel %vm546, %v550, %v516
    %v555 = vsel %vm547, %v551, %v523
    %v556 = vsel %vm548, %v552, %v530
    %v557 = vsel %vm549, %v553, %v537
    %vm558 = vcmp.eq.s32.totalorder %v554, 0
    %vm559 = vcmp.eq.s32.totalorder %v555, 0
    %vm560 = vcmp.eq.s32.totalorder %v556, 0
    %vm561 = vcmp.eq.s32.totalorder %v557, 0
    %v563 = vrot.slane %v504, 7
    %v568 = vrot.slane %v501, 7
    %v569 = vrot.slane %v502, 7
    %v570 = vsel %vm285, %v568, %v569
    %v571 = vrot.slane %v503, 7
    %v572 = vsel %vm285, %v569, %v571
    %v573 = vsel %vm285, %v571, %v563
    %v578 = vsel %vm285, %v563, %v568
    %v579 = vsel %vm558, 0.0, %v578
    %v580 = vsel %vm559, 0.0, %v570
    %v581 = vsel %vm560, 0.0, %v572
    %v582 = vsel %vm561, 0.0, %v573
    %vm583 = vcmp.eq.s32.totalorder %v554, 15
    %vm584 = vcmp.eq.s32.totalorder %v555, 15
    %vm585 = vcmp.eq.s32.totalorder %v556, 15
    %vm586 = vcmp.eq.s32.totalorder %v557, 15
    %vm587 = vcmask 1046528
    %v588 = vrot.slane %v501, 1
    %v589 = vrot.slane %v502, 1
    %v590 = vsel %vm587, %v588, %v589
    %v591 = vrot.slane %v503, 1
    %v592 = vsel %vm587, %v589, %v591
    %v593 = vrot.slane %v504, 1
    %v594 = vsel %vm587, %v591, %v593
    %v600 = vsel %vm587, %v593, %v588
    %v601 = vsel %vm583, 0.0, %v590
    %v602 = vsel %vm584, 0.0, %v592
    %v603 = vsel %vm585, 0.0, %v594
    %v604 = vsel %vm586, 0.0, %v600
    %v605 = vpack.c.bf16 %v580, %v579
    %v606 = vpack.c.bf16 %v502, %v501
    %v607 = vpack.c.bf16 %v602, %v601
    %v608 = vpack.c.bf16 %v582, %v581
    %v609 = vpack.c.bf16 %v504, %v503
    %v610 = vpack.c.bf16 %v604, %v603
    %v611 = vld [vmem:[#allocation5] sm:$0xf]
    %v612 = vld [vmem:[#allocation5 + $0x4] sm:$0xf]
    %v613 = vld [vmem:[#allocation5 + $0x8] sm:$0xf]
    %v614 = vld [vmem:[#allocation5 + $0xc] sm:$0xf]
    %v615 = vld [vmem:[#allocation5 + $0x10] sm:$0xf]
    %v616 = vld [vmem:[#allocation5 + $0x14] sm:$0xf]
    %v617 = vld [vmem:[#allocation5 + $0x18] sm:$0xf]
    %v618 = vld [vmem:[#allocation5 + $0x1c] sm:$0xf]
    %v619 = vld [vmem:[#allocation5 + $0x20] sm:$0xf]
    %v620 = vld [vmem:[#allocation5 + $0x24] sm:$0xf]
    %v621 = vld [vmem:[#allocation5 + $0x28] sm:$0xf]
    %v622 = vld [vmem:[#allocation5 + $0x2c] sm:$0xf]
    %v623 = vld [vmem:[#allocation5 + $0x30] sm:$0xf]
    %v624 = vld [vmem:[#allocation5 + $0x34] sm:$0xf]
    %v625 = vld [vmem:[#allocation5 + $0x38] sm:$0xf]
    %v626 = vld [vmem:[#allocation5 + $0x3c] sm:$0xf]
    %v627 = vld [vmem:[#allocation5 + $0x40] sm:$0xf]
    %v628 = vld [vmem:[#allocation5 + $0x44] sm:$0xf]
    %v629 = vld [vmem:[#allocation5 + $0x48] sm:$0xf]
    %v630 = vld [vmem:[#allocation5 + $0x4c] sm:$0xf]
    %v631 = vld [vmem:[#allocation5 + $0x50] sm:$0xf]
    %v632 = vld [vmem:[#allocation5 + $0x54] sm:$0xf]
    %v633 = vld [vmem:[#allocation5 + $0x58] sm:$0xf]
    %v634 = vld [vmem:[#allocation5 + $0x5c] sm:$0xf]
    %v635 = vld [vmem:[#allocation5 + $0x60] sm:$0xf]
    %v636 = vld [vmem:[#allocation5 + $0x64] sm:$0xf]
    %v637 = vld [vmem:[#allocation5 + $0x68] sm:$0xf]
    %v638 = vld [vmem:[#allocation5 + $0x6c] sm:$0xf]
    %v639 = vld [vmem:[#allocation5 + $0x70] sm:$0xf]
    %v640 = vld [vmem:[#allocation5 + $0x74] sm:$0xf]
    %v641 = vld [vmem:[#allocation5 + $0x78] sm:$0xf]
    %v642 = vld [vmem:[#allocation5 + $0x7c] sm:$0xf]
    %v643 = vld [vmem:[#allocation5 + $0x80] sm:$0xf]
    %v644 = vld [vmem:[#allocation5 + $0x84] sm:$0xf]
    %v645 = vld [vmem:[#allocation5 + $0x88] sm:$0xf]
    %v646 = vld [vmem:[#allocation5 + $0x8c] sm:$0xf]
    %v647 = vld [vmem:[#allocation5 + $0x90] sm:$0xf]
    %v648 = vld [vmem:[#allocation5 + $0x94] sm:$0xf]
    %v649 = vld [vmem:[#allocation5 + $0x98] sm:$0xf]
    %v650 = vld [vmem:[#allocation5 + $0x9c] sm:$0xf]
    %v651 = vld [vmem:[#allocation5 + $0xa0] sm:$0xf]
    %v652 = vld [vmem:[#allocation5 + $0xa4] sm:$0xf]
    %v653 = vld [vmem:[#allocation5 + $0xa8] sm:$0xf]
    %v654 = vld [vmem:[#allocation5 + $0xac] sm:$0xf]
    %v655 = vld [vmem:[#allocation5 + $0xb0] sm:$0xf]
    %v656 = vld [vmem:[#allocation5 + $0xb4] sm:$0xf]
    %v657 = vld [vmem:[#allocation5 + $0xb8] sm:$0xf]
    %v658 = vld [vmem:[#allocation5 + $0xbc] sm:$0xf]
    %v707 = vunpack.c.l.b16 %v611
    %v708 = vunpack.c.l.b16 %v612
    %v709 = vunpack.c.l.b16 %v613
    %v710 = vunpack.c.l.b16 %v614
    %v711 = vunpack.c.l.b16 %v615
    %v712 = vunpack.c.l.b16 %v616
    %v713 = vunpack.c.l.b16 %v617
    %v714 = vunpack.c.l.b16 %v618
    %v715 = vunpack.c.l.b16 %v619
    %v716 = vunpack.c.l.b16 %v620
    %v717 = vunpack.c.l.b16 %v621
    %v718 = vunpack.c.l.b16 %v622
    %v719 = vunpack.c.l.b16 %v623
    %v720 = vunpack.c.l.b16 %v624
    %v721 = vunpack.c.l.b16 %v625
    %v722 = vunpack.c.l.b16 %v626
    %v723 = vunpack.c.l.b16 %v627
    %v724 = vunpack.c.l.b16 %v628
    %v725 = vunpack.c.l.b16 %v629
    %v726 = vunpack.c.l.b16 %v630
    %v727 = vunpack.c.l.b16 %v631
    %v728 = vunpack.c.l.b16 %v632
    %v729 = vunpack.c.l.b16 %v633
    %v730 = vunpack.c.l.b16 %v634
    %v731 = vunpack.c.l.b16 %v635
    %v732 = vunpack.c.l.b16 %v636
    %v733 = vunpack.c.l.b16 %v637
    %v734 = vunpack.c.l.b16 %v638
    %v735 = vunpack.c.l.b16 %v639
    %v736 = vunpack.c.l.b16 %v640
    %v737 = vunpack.c.l.b16 %v641
    %v738 = vunpack.c.l.b16 %v642
    %v739 = vunpack.c.l.b16 %v643
    %v740 = vunpack.c.l.b16 %v644
    %v741 = vunpack.c.l.b16 %v645
    %v742 = vunpack.c.l.b16 %v646
    %v743 = vunpack.c.l.b16 %v647
    %v744 = vunpack.c.l.b16 %v648
    %v745 = vunpack.c.l.b16 %v649
    %v746 = vunpack.c.l.b16 %v650
    %v747 = vunpack.c.l.b16 %v651
    %v748 = vunpack.c.l.b16 %v652
    %v749 = vunpack.c.l.b16 %v653
    %v750 = vunpack.c.l.b16 %v654
    %v751 = vunpack.c.l.b16 %v655
    %v752 = vunpack.c.l.b16 %v656
    %v753 = vunpack.c.l.b16 %v657
    %v754 = vunpack.c.l.b16 %v658
    %v755 = vpack.c.b16 %v708, %v707
    %v756 = vpack.c.b16 %v710, %v709
    %v757 = vpack.c.b16 %v712, %v711
    %v758 = vpack.c.b16 %v714, %v713
    %v759 = vpack.c.b16 %v716, %v715
    %v760 = vpack.c.b16 %v718, %v717
    %v761 = vpack.c.b16 %v720, %v719
    %v762 = vpack.c.b16 %v722, %v721
    %v763 = vpack.c.b16 %v724, %v723
    %v764 = vpack.c.b16 %v726, %v725
    %v765 = vpack.c.b16 %v728, %v727
    %v766 = vpack.c.b16 %v730, %v729
    %v767 = vpack.c.b16 %v732, %v731
    %v768 = vpack.c.b16 %v734, %v733
    %v769 = vpack.c.b16 %v736, %v735
    %v770 = vpack.c.b16 %v738, %v737
    %v771 = vpack.c.b16 %v740, %v739
    %v772 = vpack.c.b16 %v742, %v741
    %v773 = vpack.c.b16 %v744, %v743
    %v774 = vpack.c.b16 %v746, %v745
    %v775 = vpack.c.b16 %v748, %v747
    %v776 = vpack.c.b16 %v750, %v749
    %v777 = vpack.c.b16 %v752, %v751
    %v778 = vpack.c.b16 %v754, %v753
    %803 = vmatprep.subr.bf16.mxu0 0
    %804 = vmatpush1.bf16.msra.mxu0 %v755
    %805 = vmatprep.subr.bf16.mxu0 0
    %806 = vmatpush1.bf16.msra.mxu0 %v756
    %807 = vmatprep.subr.bf16.mxu0 0
    %808 = vmatpush1.bf16.msra.mxu0 %v757
    %809 = vmatprep.subr.bf16.mxu0 0
    %810 = vmatpush1.bf16.msra.mxu0 %v758
    %811 = vmatprep.subr.bf16.mxu0 0
    %812 = vmatpush1.bf16.msra.mxu0 %v759
    %813 = vmatprep.subr.bf16.mxu0 0
    %814 = vmatpush1.bf16.msra.mxu0 %v760
    %815 = vmatprep.subr.bf16.mxu0 0
    %816 = vmatpush1.bf16.msra.mxu0 %v761
    %817 = vmatprep.subr.bf16.mxu0 0
    %818 = vmatpush1.bf16.msra.mxu0 %v762
    %819 = vmatprep.subr.bf16.mxu0 0
    %820 = vmatpush1.bf16.msra.mxu0 %v763
    %821 = vmatprep.subr.bf16.mxu0 0
    %822 = vmatpush1.bf16.msra.mxu0 %v764
    %823 = vmatprep.subr.bf16.mxu0 0
    %824 = vmatpush1.bf16.msra.mxu0 %v765
    %825 = vmatprep.subr.bf16.mxu0 0
    %826 = vmatpush1.bf16.msra.mxu0 %v766
    %827 = vmatprep.subr.bf16.mxu0 0
    %828 = vmatpush1.bf16.msra.mxu0 %v767
    %829 = vmatprep.subr.bf16.mxu0 0
    %830 = vmatpush1.bf16.msra.mxu0 %v768
    %831 = vmatprep.subr.bf16.mxu0 0
    %832 = vmatpush1.bf16.msra.mxu0 %v769
    %833 = vmatprep.subr.bf16.mxu0 0
    %834 = vmatpush1.bf16.msra.mxu0 %v770
    %835 = vmatprep.mubr.bf16.mxu0 %v606
    %836 = vmatmul.mubr.bf16.gmra.mrb[0].mxu0 %v605
    %v837 = vpop.f32.mrb[0].mxu0
    %v838 = vadd.f32 0.0, %v837
    %v839 = vpop.f32.mrb[0].mxu0
    %v840 = vpop.f32.mrb[0].mxu0
    %v841 = vadd.f32 0.0, %v840
    %v842 = vpop.f32.mrb[0].mxu0
    %843 = vmatprep.mubr.bf16.mxu0 %v609
    %844 = vmatmul.mubr.bf16.gmra.mrb[0].mxu0 %v608
    %v845 = vpop.f32.mrb[0].mxu0
    %v846 = vadd.f32 0.0, %v845
    %v847 = vpop.f32.mrb[0].mxu0
    %v848 = vpop.f32.mrb[0].mxu0
    %v849 = vadd.f32 0.0, %v848
    %v850 = vpop.f32.mrb[0].mxu0
    %851 = vdwg.mxu0
    %852 = vmatprep.subr.bf16.mxu0 0
    %853 = vmatpush1.bf16.msra.mxu0 %v771
    %854 = vmatprep.subr.bf16.mxu0 0
    %855 = vmatpush1.bf16.msra.mxu0 %v772
    %856 = vmatprep.subr.bf16.mxu0 0
    %857 = vmatpush1.bf16.msra.mxu0 %v773
    %858 = vmatprep.subr.bf16.mxu0 0
    %859 = vmatpush1.bf16.msra.mxu0 %v774
    %860 = vmatprep.subr.bf16.mxu0 0
    %861 = vmatpush1.bf16.msra.mxu0 %v775
    %862 = vmatprep.subr.bf16.mxu0 0
    %863 = vmatpush1.bf16.msra.mxu0 %v776
    %864 = vmatprep.subr.bf16.mxu0 0
    %865 = vmatpush1.bf16.msra.mxu0 %v777
    %866 = vmatprep.subr.bf16.mxu0 0
    %867 = vmatpush1.bf16.msra.mxu0 %v778
    %868 = vmatprep.subr.bf16.mxu0 0
    %869 = vmatpush1.bf16.msra.mxu0 0
    %870 = vmatprep.subr.bf16.mxu0 0
    %871 = vmatpush1.bf16.msra.mxu0 0
    %872 = vmatprep.subr.bf16.mxu0 0
    %873 = vmatpush1.bf16.msra.mxu0 0
    %874 = vmatprep.subr.bf16.mxu0 0
    %875 = vmatpush1.bf16.msra.mxu0 0
    %876 = vmatprep.subr.bf16.mxu0 0
    %877 = vmatpush1.bf16.msra.mxu0 0
    %878 = vmatprep.subr.bf16.mxu0 0
    %879 = vmatpush1.bf16.msra.mxu0 0
    %880 = vmatprep.subr.bf16.mxu0 0
    %881 = vmatpush1.bf16.msra.mxu0 0
    %882 = vmatprep.subr.bf16.mxu0 0
    %883 = vmatpush1.bf16.msra.mxu0 0
    %884 = vmatprep.mubr.bf16.mxu0 0
    %885 = vmatmul.mubr.bf16.gmra.mrb[0].mxu0 %v607
    %v886 = vpop.f32.mrb[0].mxu0
    %v887 = vadd.f32 %v838, %v886
    %v888 = vpop.f32.mrb[0].mxu0
    %v889 = vpop.f32.mrb[0].mxu0
    %v890 = vadd.f32 %v841, %v889
    %v891 = vpop.f32.mrb[0].mxu0
    %892 = vmatprep.mubr.bf16.mxu0 0
    %893 = vmatmul.mubr.bf16.gmra.mrb[0].mxu0 %v610
    %v894 = vpop.f32.mrb[0].mxu0
    %v895 = vadd.f32 %v846, %v894
    %v896 = vpop.f32.mrb[0].mxu0
    %v897 = vpop.f32.mrb[0].mxu0
    %v898 = vadd.f32 %v849, %v897
    %v899 = vpop.f32.mrb[0].mxu0
    %900 = vdwg.mxu0
    %v901 = vadd.f32 %v887, %v890
    %v902 = vadd.f32 %v901, %v895
    %v903 = vadd.f32 %v902, %v898
    %v904 = vrot.slane %v903, 4
    %v905 = vadd.f32 %v903, %v904
    %v906 = vrot.slane %v905, 2
    %v907 = vadd.f32 %v905, %v906
    %v908 = vrot.slane %v907, 1
    %v909 = vadd.f32 %v907, %v908
    %v910 = vmul.f32 %v887, %v887
    %v911 = vmul.f32 %v890, %v890
    %v912 = vmul.f32 %v895, %v895
    %v913 = vmul.f32 %v898, %v898
    %v914 = vadd.f32 %v910, %v911
    %v915 = vadd.f32 %v914, %v912
    %v916 = vadd.f32 %v915, %v913
    %v917 = vrot.slane %v916, 4
    %v918 = vadd.f32 %v916, %v917
    %v919 = vrot.slane %v918, 2
    %v920 = vadd.f32 %v918, %v919
    %v921 = vrot.slane %v920, 1
    %v922 = vadd.f32 %v920, %v921
    %v923 = vsel %vm285, %v909, %v922
    %924 = vmatprep.subr.mxu0 0.0
    %925 = vmatpush1.msra.mxu0 %v287
    %926 = vmatprep.subr.mxu0 0.0
    %927 = vmatpush1.msra.mxu0 %v288
    %928 = vmatprep.subr.mxu0 0.0
    %929 = vmatpush1.msra.mxu0 %v289
    %930 = vmatprep.subr.mxu0 0.0
    %931 = vmatpush1.msra.mxu0 %v290
    %932 = vmatprep.subr.mxu0 0.0
    %933 = vmatpush1.msra.mxu0 %v291
    %934 = vmatprep.subr.mxu0 0.0
    %935 = vmatpush1.msra.mxu0 %v292
    %936 = vmatprep.subr.mxu0 0.0
    %937 = vmatpush1.msra.mxu0 %v293
    %938 = vmatprep.subr.mxu0 0.0
    %939 = vmatpush1.msra.mxu0 %v294
    %940 = vmatprep.subr.mxu0 0.0
    %941 = vmatpush1.msra.mxu0 %v295
    %942 = vmatprep.subr.mxu0 0.0
    %943 = vmatpush1.msra.mxu0 %v296
    %944 = vmatprep.subr.mxu0 0.0
    %945 = vmatpush1.msra.mxu0 %v297
    %946 = vmatprep.subr.mxu0 0.0
    %947 = vmatpush1.msra.mxu0 %v298
    %948 = vmatprep.subr.mxu0 0.0
    %949 = vmatpush1.msra.mxu0 %v299
    %950 = vmatprep.subr.mxu0 0.0
    %951 = vmatpush1.msra.mxu0 %v300
    %952 = vmatprep.subr.mxu0 0.0
    %953 = vmatpush1.msra.mxu0 %v301
    %954 = vmatprep.subr.mxu0 0.0
    %955 = vmatpush1.msra.mxu0 %v302
    %956 = vmatprep.subr.mxu0 0.0
    %957 = vmatpush1.msra.mxu0 0.0
    %958 = vmatprep.subr.mxu0 0.0
    %959 = vmatpush1.msra.mxu0 0.0
    %960 = vmatprep.subr.mxu0 0.0
    %961 = vmatpush1.msra.mxu0 0.0
    %962 = vmatprep.subr.mxu0 0.0
    %963 = vmatpush1.msra.mxu0 0.0
    %964 = vmatprep.subr.mxu0 0.0
    %965 = vmatpush1.msra.mxu0 0.0
    %966 = vmatprep.subr.mxu0 0.0
    %967 = vmatpush1.msra.mxu0 0.0
    %968 = vmatprep.subr.mxu0 0.0
    %969 = vmatpush1.msra.mxu0 0.0
    %970 = vmatprep.subr.mxu0 0.0
    %971 = vmatpush1.msra.mxu0 0.0
    %972 = vmatprep.subr.mxu0 0.0
    %973 = vmatpush1.msra.mxu0 0.0
    %974 = vmatprep.subr.mxu0 0.0
    %975 = vmatpush1.msra.mxu0 0.0
    %976 = vmatprep.subr.mxu0 0.0
    %977 = vmatpush1.msra.mxu0 0.0
    %978 = vmatprep.subr.mxu0 0.0
    %979 = vmatpush1.msra.mxu0 0.0
    %980 = vmatprep.subr.mxu0 0.0
    %981 = vmatpush1.msra.mxu0 0.0
    %982 = vmatprep.subr.mxu0 0.0
    %983 = vmatpush1.msra.mxu0 0.0
    %984 = vmatprep.subr.mxu0 0.0
    %985 = vmatpush1.msra.mxu0 0.0
    %986 = vmatprep.subr.mxu0 0.0
    %987 = vmatpush1.msra.mxu0 0.0
    %988 = vmatprep.mubr.f32.mxu0 0.0
    %989 = vmatmul.mubr.f32.gmra.mrb[0].mxu0 %v923
    %v990 = vpop.f32.mrb[0].mxu0
    %v991 = vadd.f32 0.0, %v990
    %v992 = vpop.f32.mrb[0].mxu0
    %993 = vdwg.mxu0
    %v994 = vmul.f32 %v991, 0.001953125
    %v995 = vmul.f32 %v994, %v994
    %v997 = vrot.slane %v995, 7
    %v999 = vsub.f32 %v994, %v997
    %v1000 = vld [vmem:[%s5] sm:$0x1]
    %v1001 = vadd.f32 %v999, 1e-05
    %v1002 = vrsqrt.pop %v1001
    %v1005 = vunpack.c.l.s4 1966171168
    %v1006 = vunpack.c.0.s8 %v1005
    %v1007 = vlaneseq
    %v1008 = vshrl.u32 %v1007, 7
    %v1009 = vsub.s32 %v1006, %v1008
    %v1010 = vrot.slane %v1002, %v1009
    %v1011 = vcombine.high %v1010, %v1010
    %v1013 = vunpack.c.l.s4 1966171168
    %v1014 = vunpack.c.0.s8 %v1013
    %v1015 = vlaneseq
    %v1016 = vshrl.u32 %v1015, 7
    %v1017 = vsub.s32 %v1014, %v1016
    %v1018 = vrot.slane %v1011, %v1017
    %v1020 = vmul.f32 %v1000, %v1018
    %v1021 = vld [vmem:[%s6] sm:$0x1]
    %v1022 = vmul.f32 %v994, %v1020
    %v1023 = vsub.f32 %v1021, %v1022
    %v1025 = vlaneseq
    %v1026 = vshrl.u32 %v1025, 7
    %v1027 = vsub.s32 0, %v1026
    %v1028 = vrot.slane %v1023, %v1027
    %v1030 = vsel %vm285, %v1020, %v1028
    %v1032 = vsel %vm411, %v1030, 0
    %1034 = vmatprep.subr.mxu0 0.0
    %1035 = vmatpush1.msra.mxu0 %v410
    %1036 = vmatprep.subr.mxu0 0.0
    %1037 = vmatpush1.msra.mxu0 0.0
    %1038 = vmatprep.subr.mxu0 0.0
    %1039 = vmatpush1.msra.mxu0 0.0
    %1040 = vmatprep.subr.mxu0 0.0
    %1041 = vmatpush1.msra.mxu0 0.0
    %1042 = vmatprep.subr.mxu0 0.0
    %1043 = vmatpush1.msra.mxu0 0.0
    %1044 = vmatprep.subr.mxu0 0.0
    %1045 = vmatpush1.msra.mxu0 0.0
    %1046 = vmatprep.subr.mxu0 0.0
    %1047 = vmatpush1.msra.mxu0 0.0
    %1048 = vmatprep.subr.mxu0 0.0
    %1049 = vmatpush1.msra.mxu0 0.0
    %1050 = vmatprep.subr.mxu0 0.0
    %1051 = vmatpush1.msra.mxu0 0.0
    %1052 = vmatprep.subr.mxu0 0.0
    %1053 = vmatpush1.msra.mxu0 0.0
    %1054 = vmatprep.subr.mxu0 0.0
    %1055 = vmatpush1.msra.mxu0 0.0
    %1056 = vmatprep.subr.mxu0 0.0
    %1057 = vmatpush1.msra.mxu0 0.0
    %1058 = vmatprep.subr.mxu0 0.0
    %1059 = vmatpush1.msra.mxu0 0.0
    %1060 = vmatprep.subr.mxu0 0.0
    %1061 = vmatpush1.msra.mxu0 0.0
    %1062 = vmatprep.subr.mxu0 0.0
    %1063 = vmatpush1.msra.mxu0 0.0
    %1064 = vmatprep.subr.mxu0 0.0
    %1065 = vmatpush1.msra.mxu0 0.0
    %1066 = vmatprep.subr.mxu0 0.0
    %1067 = vmatpush1.msra.mxu0 0.0
    %1068 = vmatprep.subr.mxu0 0.0
    %1069 = vmatpush1.msra.mxu0 0.0
    %1070 = vmatprep.subr.mxu0 0.0
    %1071 = vmatpush1.msra.mxu0 0.0
    %1072 = vmatprep.subr.mxu0 0.0
    %1073 = vmatpush1.msra.mxu0 0.0
    %1074 = vmatprep.subr.mxu0 0.0
    %1075 = vmatpush1.msra.mxu0 0.0
    %1076 = vmatprep.subr.mxu0 0.0
    %1077 = vmatpush1.msra.mxu0 0.0
    %1078 = vmatprep.subr.mxu0 0.0
    %1079 = vmatpush1.msra.mxu0 0.0
    %1080 = vmatprep.subr.mxu0 0.0
    %1081 = vmatpush1.msra.mxu0 0.0
    %1082 = vmatprep.subr.mxu0 0.0
    %1083 = vmatpush1.msra.mxu0 0.0
    %1084 = vmatprep.subr.mxu0 0.0
    %1085 = vmatpush1.msra.mxu0 0.0
    %1086 = vmatprep.subr.mxu0 0.0
    %1087 = vmatpush1.msra.mxu0 0.0
    %1088 = vmatprep.subr.mxu0 0.0
    %1089 = vmatpush1.msra.mxu0 0.0
    %1090 = vmatprep.subr.mxu0 0.0
    %1091 = vmatpush1.msra.mxu0 0.0
    %1092 = vmatprep.subr.mxu0 0.0
    %1093 = vmatpush1.msra.mxu0 0.0
    %1094 = vmatprep.subr.mxu0 0.0
    %1095 = vmatpush1.msra.mxu0 0.0
    %1096 = vmatprep.subr.mxu0 0.0
    %1097 = vmatpush1.msra.mxu0 0.0
    %1098 = vmatprep.mubr.f32.mxu0 0.0
    %1099 = vmatmul.mubr.f32.gmra.mrb[0].mxu0 %v1032
    %v1100 = vpop.f32.mrb[0].mxu0
    %v1101 = vadd.f32 0.0, %v1100
    %v1102 = vpop.f32.mrb[0].mxu0
    %1103 = vdwg.mxu0
    %v1104 = vlaneseq
    %v1105 = vshrl.u32 %v1104, 7
    %v1106 = vsub.s32 0, %v1105
    %v1107 = vrot.slane %v1101, %v1106
    %v1108 = vmul.f32 %v887, %v1107
    %v1109 = vmul.f32 %v890, %v1107
    %v1110 = vmul.f32 %v895, %v1107
    %v1111 = vmul.f32 %v898, %v1107
    %v1112 = vlaneseq
    %v1113 = vshrl.u32 %v1112, 7
    %v1114 = vsub.s32 1, %v1113
    %v1115 = vrot.slane %v1101, %v1114
    %v1116 = vadd.f32 %v1108, %v1115
    %v1117 = vadd.f32 %v1109, %v1115
    %v1118 = vadd.f32 %v1110, %v1115
    %v1119 = vadd.f32 %v1111, %v1115
    %v1120 = vmax.f32 %v1116, 0.0
    %v1121 = vmax.f32 %v1117, 0.0
    %v1122 = vmax.f32 %v1118, 0.0
    %v1123 = vmax.f32 %v1119, 0.0
    %1124 = vst [vmem:[#allocation7] sm:$0xff] %v1120
    %1125 = vst [vmem:[#allocation7 + $0x8] sm:$0xff] %v1121
    %1126 = vst [vmem:[#allocation7 + $0x10] sm:$0xff] %v1122
    %1127 = vst [vmem:[#allocation7 + $0x18] sm:$0xff] %v1123
    // Predicated region
    $region46: #{tpu_custom_call.1} parent=1 // pred_check
      _
    $region47: #{tpu_custom_call.1} parent=1 // pred_check_branch
      %1129 = sbr.rel (0) target = $region49
    $region48: #{tpu_custom_call.1} parent=1 // pred_region
      %s1131 = ssub.s32 512, 512
      %1132 = vsyncadd [#allocation4], %s1131
      %s1133 = sshll.u32 [#allocation7], 4
      %s1134 = int_to_ptr.vmem [resolvable:$true] %s1133
      %1139 = dma.vmem_to_hbm [thread:$0]  %s1134, 512, %s9, [#allocation4], 128, 128, 8
    $region49: #{tpu_custom_call.1} parent=1 // pred_fallthru
      _
    // Predicated region
    $region50: #{tpu_custom_call.1} parent=1 // pred_check
      _
    $region51: #{tpu_custom_call.1} parent=1 // pred_check_branch
      %1141 = sbr.rel (0) target = $region53
    $region52: #{tpu_custom_call.1} parent=1 // pred_region
      %1142 = dma.done [#allocation4], 512
    $region53: #{tpu_custom_call.1} parent=1 // pred_fallthru
      _
    %1143 = vsyncpa [#allocation3], 1
    %1144 = vsyncpa [#allocation6], 1
    %1145 = vsyncpa [#allocation4], 1

</llo_original>
